<compile_context>
chip_gen: v7x
topology: tpu7x:2x2x1
jax: 0.10.0
libtpu: 0.0.40
codegen_flags: <defaults>
</compile_context>

<pallas_src>
import jax
import jax.numpy as jnp
from jax.experimental import pallas as pl
from jax.experimental.pallas import tpu as pltpu


def _rope_decode_attn_kernel(f_row_ref, f_col_ref, q_ref, k_ref, kcol_ref, v_ref,
                             ck_ref, cv_ref, res_ref, knew_ref):
    C = f_row_ref.shape[-1]          # head_dim // 2
    D = res_ref.shape[-1]            # head_dim
    scale = 1.0 / D                  # reference divides the scores by head_dim

    f_row = f_row_ref[...]           # (1, C)
    qf = q_ref[0, 0] * f_row         # (1, C)  rotary-scaled first half of q
    kf = k_ref[0, 0] * f_row         # (1, C)  rotary-scaled first half of k

    # --- rotated new-K column output: concat(kf, kf) along head_dim (sublanes) ---
    kf_col = kcol_ref[0, 0] * f_col_ref[...]        # (C, 1)
    knew_ref[0, 0, :C, :] = kf_col
    knew_ref[0, 0, C:, :] = kf_col

    # --- attention scores ---
    # new token: q_rot . k_rot over the full head_dim == 2 * (qf . kf)
    s_new = 2.0 * jnp.sum(qf * kf, axis=-1, keepdims=True) * scale            # (1, 1)
    # cache: q_rot (first half duplicated) . cache_K == qf . (top + bottom halves)
    ck_sum = ck_ref[0, 0, :C, :] + ck_ref[0, 0, C:, :]                        # (C, L)
    s_cache = jnp.dot(qf, ck_sum, preferred_element_type=jnp.float32) * scale  # (1, L)

    # --- softmax over [new | cache] without materializing the concatenation ---
    m = jnp.maximum(s_new, jnp.max(s_cache, axis=-1, keepdims=True))          # (1, 1)
    e_new = jnp.exp(s_new - m)                                                # (1, 1)
    e_cache = jnp.exp(s_cache - m)                                            # (1, L)
    denom = e_new + jnp.sum(e_cache, axis=-1, keepdims=True)                  # (1, 1)

    # --- attention-weighted values ---
    out = e_new * v_ref[0, 0] + jnp.dot(e_cache, cv_ref[0, 0],
                                        preferred_element_type=jnp.float32)   # (1, D)
    res_ref[0, 0] = (out / denom).astype(res_ref.dtype)


def rope_gen_orca_forward(q, k, v, cache_K, cache_V, freqs_cis):
    """Pallas implementation of RoPE_Gen_Orca.forward (seq == 1).

    q, k, v:   (B, 1, H, D)    cache_K: (B, H, D, L)    cache_V: (B, H, L, D)
    freqs_cis: (1, D // 2)
    Returns (res (B,1,H,D), k_cat (B,H,D,L+1), v_cat (B,H,L+1,D)).
    """
    B, S, H, D = q.shape
    assert S == 1, "module hard-codes seq = 1"
    C = D // 2
    L = cache_K.shape[-1]
    f32 = jnp.float32

    # Layout plumbing (XLA): only the first half of q/k is used by the module.
    q_row = jnp.transpose(q[:, :, :, :C], (0, 2, 1, 3)).astype(f32)   # (B, H, 1, C)
    k_row = jnp.transpose(k[:, :, :, :C], (0, 2, 1, 3)).astype(f32)   # (B, H, 1, C)
    k_col = jnp.transpose(k[:, :, :, :C], (0, 2, 3, 1)).astype(f32)   # (B, H, C, 1)
    v_row = jnp.transpose(v, (0, 2, 1, 3)).astype(f32)                # (B, H, 1, D)
    f_row = freqs_cis.reshape(1, C).astype(f32)
    f_col = freqs_cis.reshape(C, 1).astype(f32)
    ck = cache_K.astype(f32)
    cv = cache_V.astype(f32)

    in_elems = 2 * C + B * H * (3 * C + D + 2 * D * L)
    out_elems = B * H * 2 * D
    cost = pl.CostEstimate(
        flops=B * H * (3 * C * L + 2 * L * D + 5 * C + 4 * L + 3 * D),
        transcendentals=B * H * (L + 1),
        bytes_accessed=4 * (in_elems + out_elems),
    )

    res_bh, k_new = pl.pallas_call(
        _rope_decode_attn_kernel,
        out_shape=(jax.ShapeDtypeStruct((B, H, 1, D), f32),
                   jax.ShapeDtypeStruct((B, H, D, 1), f32)),
        grid_spec=pltpu.PrefetchScalarGridSpec(
            num_scalar_prefetch=0,
            grid=(B, H),
            in_specs=[
                pl.BlockSpec((1, C), lambda b, h: (0, 0)),              # freqs (row, resident)
                pl.BlockSpec((C, 1), lambda b, h: (0, 0)),              # freqs (col, resident)
                pl.BlockSpec((1, 1, 1, C), lambda b, h: (b, h, 0, 0)),  # q half
                pl.BlockSpec((1, 1, 1, C), lambda b, h: (b, h, 0, 0)),  # k half (row)
                pl.BlockSpec((1, 1, C, 1), lambda b, h: (b, h, 0, 0)),  # k half (col)
                pl.BlockSpec((1, 1, 1, D), lambda b, h: (b, h, 0, 0)),  # v
                pl.BlockSpec((1, 1, D, L), lambda b, h: (b, h, 0, 0)),  # cache_K
                pl.BlockSpec((1, 1, L, D), lambda b, h: (b, h, 0, 0)),  # cache_V
            ],
            out_specs=(
                pl.BlockSpec((1, 1, 1, D), lambda b, h: (b, h, 0, 0)),  # attention result
                pl.BlockSpec((1, 1, D, 1), lambda b, h: (b, h, 0, 0)),  # rotated new K column
            ),
        ),
        compiler_params=pltpu.CompilerParams(
            dimension_semantics=("parallel", "parallel"),
            vmem_limit_bytes=32 * 1024 * 1024,
        ),
        cost_estimate=cost,
    )(f_row, f_col, q_row, k_row, k_col, v_row, ck, cv)

    res = jnp.transpose(res_bh, (0, 2, 1, 3))          # (B, 1, H, D)
    # TODO(synk): fuse the pure-memcpy cache concatenation into the kernel
    # (offset stores / input_output_aliases) once unaligned minor-dim stores are
    # verified on the target Mosaic version; it carries no compute, so XLA
    # concatenate is used here.
    k_cat = jnp.concatenate([k_new, ck], axis=3)       # (B, H, D, L + 1)
    v_cat = jnp.concatenate([v_row, cv], axis=2)       # (B, H, L + 1, D)
    return res, k_cat, v_cat


# ----------------------------- reference (mirrors the torch code) -----------------------------
def precompute_freqs_cis(dim, end, theta=10000.0):
    freqs = 1.0 / theta ** (jnp.arange(0, dim, 2, dtype=jnp.float32)[: dim // 2] / dim)
    t = jnp.arange(end, dtype=jnp.float32)
    freqs = jnp.outer(t, freqs)
    return freqs + freqs          # == ones*freqs + ones*freqs in the torch code


def reference_forward(q, k, v, cache_K, cache_V, freqs_cis):
    B, S, H, D = q.shape
    C = D // 2
    fc = freqs_cis.reshape(1, S, 1, C)
    xq = jnp.concatenate([q[:, :, :, :C] * fc] * 2, axis=-1)
    xk = jnp.concatenate([k[:, :, :, :C] * fc] * 2, axis=-1)
    xq = jnp.swapaxes(xq, 1, 2)
    xk = jnp.swapaxes(xk, 1, 2)
    v_t = jnp.swapaxes(v, 1, 2)
    k_cat = jnp.concatenate([jnp.swapaxes(xk, -2, -1), cache_K], axis=3)
    v_cat = jnp.concatenate([v_t, cache_V], axis=2)
    att = jnp.matmul(xq, k_cat) / D
    att = jax.nn.softmax(att, axis=-1)
    res = jnp.swapaxes(jnp.matmul(att, v_cat), 1, 2)
    return res, k_cat, v_cat


if __name__ == "__main__":
    B = 2
    n_head = 2
    head_dim = 256                  # n_embd // n_head; 256 keeps every block (8,128)-aligned
    n_embd = n_head * head_dim
    cache_len = 128
    seq = 1

    key = jax.random.PRNGKey(0)
    kq, kk, kv, kck, kcv = jax.random.split(key, 5)
    q = jax.random.normal(kq, (B, seq, n_head, head_dim), dtype=jnp.float32)
    k = jax.random.normal(kk, (B, seq, n_head, head_dim), dtype=jnp.float32)
    v = jax.random.normal(kv, (B, seq, n_head, head_dim), dtype=jnp.float32)
    cache_K = jax.random.normal(kck, (B, n_head, head_dim, cache_len), dtype=jnp.float32)
    cache_V = jax.random.normal(kcv, (B, n_head, cache_len, head_dim), dtype=jnp.float32)

    # Module constructor: freqs_cis = precompute_freqs_cis(head_dim, 2048*2)[0:seq]
    freqs_tbl = precompute_freqs_cis(head_dim, 2048 * 2)
    freqs_cis = freqs_tbl[0:seq]

    fwd = jax.jit(rope_gen_orca_forward)

    res, k_out, v_out = fwd(q, k, v, cache_K, cache_V, freqs_cis)
    jax.block_until_ready((res, k_out, v_out))

    res_r, k_r, v_r = reference_forward(q, k, v, cache_K, cache_V, freqs_cis)
    assert res.shape == (B, seq, n_head, head_dim)
    assert k_out.shape == (B, n_head, head_dim, cache_len + 1)
    assert v_out.shape == (B, n_head, cache_len + 1, head_dim)
    assert jnp.allclose(res, res_r, atol=1e-4, rtol=1e-4)
    assert jnp.allclose(k_out, k_r, atol=1e-5, rtol=1e-5)
    assert jnp.allclose(v_out, v_r, atol=1e-5, rtol=1e-5)

    # Extra check with a non-zero RoPE row (module's row 0 is all zeros, which
    # would not exercise the rotary path numerically).
    freqs_nz = freqs_tbl[3:4]
    res2, k2, v2 = fwd(q, k, v, cache_K, cache_V, freqs_nz)
    res2_r, k2_r, v2_r = reference_forward(q, k, v, cache_K, cache_V, freqs_nz)
    assert jnp.allclose(res2, res2_r, atol=1e-4, rtol=1e-4)
    assert jnp.allclose(k2, k2_r, atol=1e-5, rtol=1e-5)
    assert jnp.allclose(v2, v2_r, atol=1e-5, rtol=1e-5)

    print("KERNEL_OK")
</pallas_src>

<mosaic_0001>
module attributes {stable_mosaic.version = 11 : i64} {
  func.func @_rope_decode_attn_kernel(%arg0: i32, %arg1: i32, %arg2: memref<1x128xf32, #tpu.memory_space<vmem>>, %arg3: memref<128x1xf32, #tpu.memory_space<vmem>>, %arg4: memref<1x1x1x128xf32, #tpu.memory_space<vmem>>, %arg5: memref<1x1x1x128xf32, #tpu.memory_space<vmem>>, %arg6: memref<1x1x128x1xf32, #tpu.memory_space<vmem>>, %arg7: memref<1x1x1x256xf32, #tpu.memory_space<vmem>>, %arg8: memref<1x1x256x128xf32, #tpu.memory_space<vmem>>, %arg9: memref<1x1x128x256xf32, #tpu.memory_space<vmem>>, %arg10: memref<1x1x1x256xf32, #tpu.memory_space<vmem>>, %arg11: memref<1x1x256x1xf32, #tpu.memory_space<vmem>>) attributes {dimension_semantics = [#tpu.dimension_semantics<parallel>, #tpu.dimension_semantics<parallel>], iteration_bounds = array<i64: 2, 2>, scalar_prefetch = 0 : i64, scratch_operands = 0 : i64, tpu.core_type = #tpu.core_type<tc>, window_params = [{pipeline_mode = #tpu.pipeline_mode<synchronous>, transform_indices = @transform_0, window_bounds = array<i64: 1, 128>}, {pipeline_mode = #tpu.pipeline_mode<synchronous>, transform_indices = @transform_1, window_bounds = array<i64: 128, 1>}, {transform_indices = @transform_2, window_bounds = array<i64: 1, 1, 1, 128>}, {transform_indices = @transform_3, window_bounds = array<i64: 1, 1, 1, 128>}, {transform_indices = @transform_4, window_bounds = array<i64: 1, 1, 128, 1>}, {transform_indices = @transform_5, window_bounds = array<i64: 1, 1, 1, 256>}, {transform_indices = @transform_6, window_bounds = array<i64: 1, 1, 256, 128>}, {transform_indices = @transform_7, window_bounds = array<i64: 1, 1, 128, 256>}, {transform_indices = @transform_8, window_bounds = array<i64: 1, 1, 1, 256>}, {transform_indices = @transform_9, window_bounds = array<i64: 1, 1, 256, 1>}]} {
    %c0 = arith.constant 0 : index
    %c0_0 = arith.constant 0 : index
    %0 = vector.load %arg2[%c0, %c0_0] : memref<1x128xf32, #tpu.memory_space<vmem>>, vector<1x128xf32>
    %c0_1 = arith.constant 0 : index
    %c0_2 = arith.constant 0 : index
    %c0_3 = arith.constant 0 : index
    %c0_4 = arith.constant 0 : index
    %1 = vector.load %arg4[%c0_1, %c0_2, %c0_3, %c0_4] : memref<1x1x1x128xf32, #tpu.memory_space<vmem>>, vector<1x1x1x128xf32>
    %2 = vector.shape_cast %1 : vector<1x1x1x128xf32> to vector<1x128xf32>
    %3 = arith.mulf %2, %0 : vector<1x128xf32>
    %c0_5 = arith.constant 0 : index
    %c0_6 = arith.constant 0 : index
    %c0_7 = arith.constant 0 : index
    %c0_8 = arith.constant 0 : index
    %4 = vector.load %arg5[%c0_5, %c0_6, %c0_7, %c0_8] : memref<1x1x1x128xf32, #tpu.memory_space<vmem>>, vector<1x1x1x128xf32>
    %5 = vector.shape_cast %4 : vector<1x1x1x128xf32> to vector<1x128xf32>
    %6 = arith.mulf %5, %0 : vector<1x128xf32>
    %c0_9 = arith.constant 0 : index
    %c0_10 = arith.constant 0 : index
    %c0_11 = arith.constant 0 : index
    %c0_12 = arith.constant 0 : index
    %7 = vector.load %arg6[%c0_9, %c0_10, %c0_11, %c0_12] : memref<1x1x128x1xf32, #tpu.memory_space<vmem>>, vector<1x1x128x1xf32>
    %8 = vector.shape_cast %7 : vector<1x1x128x1xf32> to vector<128x1xf32>
    %c0_13 = arith.constant 0 : index
    %c0_14 = arith.constant 0 : index
    %9 = vector.load %arg3[%c0_13, %c0_14] : memref<128x1xf32, #tpu.memory_space<vmem>>, vector<128x1xf32>
    %10 = arith.mulf %8, %9 : vector<128x1xf32>
    %c0_15 = arith.constant 0 : index
    %c0_16 = arith.constant 0 : index
    %c0_17 = arith.constant 0 : index
    %c0_18 = arith.constant 0 : index
    %11 = vector.load %arg11[%c0_15, %c0_16, %c0_17, %c0_18] : memref<1x1x256x1xf32, #tpu.memory_space<vmem>>, vector<1x1x128x1xf32>
    %12 = vector.shape_cast %11 : vector<1x1x128x1xf32> to vector<128x1xf32>
    %13 = vector.shape_cast %10 : vector<128x1xf32> to vector<1x1x128x1xf32>
    tpu.vector_store %arg11[%c0_15, %c0_16, %c0_17, %c0_18], %13 {strides = array<i32>} : memref<1x1x256x1xf32, #tpu.memory_space<vmem>>, vector<1x1x128x1xf32>,
    %c0_19 = arith.constant 0 : index
    %c0_20 = arith.constant 0 : index
    %c128 = arith.constant 128 : index
    %c0_21 = arith.constant 0 : index
    %14 = vector.load %arg11[%c0_19, %c0_20, %c128, %c0_21] : memref<1x1x256x1xf32, #tpu.memory_space<vmem>>, vector<1x1x128x1xf32>
    %15 = vector.shape_cast %14 : vector<1x1x128x1xf32> to vector<128x1xf32>
    %16 = vector.shape_cast %10 : vector<128x1xf32> to vector<1x1x128x1xf32>
    tpu.vector_store %arg11[%c0_19, %c0_20, %c128, %c0_21], %16 {strides = array<i32>} : memref<1x1x256x1xf32, #tpu.memory_space<vmem>>, vector<1x1x128x1xf32>,
    %17 = arith.mulf %3, %6 : vector<1x128xf32>
    %cst = arith.constant dense<0.000000e+00> : vector<1xf32>
    %18 = vector.multi_reduction <add>, %17, %cst [1] : vector<1x128xf32> to vector<1xf32>
    %19 = vector.shape_cast %18 : vector<1xf32> to vector<1x1xf32>
    %cst_22 = arith.constant 2.000000e+00 : f32
    %20 = vector.broadcast %cst_22 : f32 to vector<1x1xf32>
    %21 = arith.mulf %20, %19 : vector<1x1xf32>
    %cst_23 = arith.constant 3.906250e-03 : f32
    %22 = vector.broadcast %cst_23 : f32 to vector<1x1xf32>
    %23 = arith.mulf %21, %22 : vector<1x1xf32>
    %c0_24 = arith.constant 0 : index
    %c0_25 = arith.constant 0 : index
    %c0_26 = arith.constant 0 : index
    %c0_27 = arith.constant 0 : index
    %24 = vector.load %arg8[%c0_24, %c0_25, %c0_26, %c0_27] : memref<1x1x256x128xf32, #tpu.memory_space<vmem>>, vector<1x1x128x128xf32>
    %25 = vector.shape_cast %24 : vector<1x1x128x128xf32> to vector<128x128xf32>
    %c0_28 = arith.constant 0 : index
    %c0_29 = arith.constant 0 : index
    %c128_30 = arith.constant 128 : index
    %c0_31 = arith.constant 0 : index
    %26 = vector.load %arg8[%c0_28, %c0_29, %c128_30, %c0_31] : memref<1x1x256x128xf32, #tpu.memory_space<vmem>>, vector<1x1x128x128xf32>
    %27 = vector.shape_cast %26 : vector<1x1x128x128xf32> to vector<128x128xf32>
    %28 = arith.addf %25, %27 : vector<128x128xf32>
    %cst_32 = arith.constant dense<0.000000e+00> : vector<1x128xf32>
    %29 = tpu.matmul %3, %28, %cst_32 {dimension_numbers = #tpu.dot_dimension_numbers<[1], [0], [0], [1], [0, 0, 1, 1], [], []>} : vector<1x128xf32>, vector<128x128xf32>, vector<1x128xf32> -> vector<1x128xf32>
    %cst_33 = arith.constant 3.906250e-03 : f32
    %30 = vector.broadcast %cst_33 : f32 to vector<1x128xf32>
    %31 = arith.mulf %29, %30 : vector<1x128xf32>
    %cst_34 = arith.constant dense<0xFF800000> : vector<1xf32>
    %32 = vector.multi_reduction <maximumf>, %31, %cst_34 [1] : vector<1x128xf32> to vector<1xf32>
    %33 = vector.shape_cast %32 : vector<1xf32> to vector<1x1xf32>
    %34 = arith.maximumf %23, %33 : vector<1x1xf32>
    %35 = arith.subf %23, %34 : vector<1x1xf32>
    %36 = math.exp %35 : vector<1x1xf32>
    %37 = vector.broadcast %34 : vector<1x1xf32> to vector<1x128xf32>
    %38 = arith.subf %31, %37 : vector<1x128xf32>
    %39 = math.exp %38 : vector<1x128xf32>
    %cst_35 = arith.constant dense<0.000000e+00> : vector<1xf32>
    %40 = vector.multi_reduction <add>, %39, %cst_35 [1] : vector<1x128xf32> to vector<1xf32>
    %41 = vector.shape_cast %40 : vector<1xf32> to vector<1x1xf32>
    %42 = arith.addf %36, %41 : vector<1x1xf32>
    %c0_36 = arith.constant 0 : index
    %c0_37 = arith.constant 0 : index
    %c0_38 = arith.constant 0 : index
    %c0_39 = arith.constant 0 : index
    %43 = vector.load %arg7[%c0_36, %c0_37, %c0_38, %c0_39] : memref<1x1x1x256xf32, #tpu.memory_space<vmem>>, vector<1x1x1x256xf32>
    %44 = vector.shape_cast %43 : vector<1x1x1x256xf32> to vector<1x256xf32>
    %45 = vector.broadcast %36 : vector<1x1xf32> to vector<1x256xf32>
    %46 = arith.mulf %45, %44 : vector<1x256xf32>
    %c0_40 = arith.constant 0 : index
    %c0_41 = arith.constant 0 : index
    %c0_42 = arith.constant 0 : index
    %c0_43 = arith.constant 0 : index
    %47 = vector.load %arg9[%c0_40, %c0_41, %c0_42, %c0_43] : memref<1x1x128x256xf32, #tpu.memory_space<vmem>>, vector<1x1x128x256xf32>
    %48 = vector.shape_cast %47 : vector<1x1x128x256xf32> to vector<128x256xf32>
    %cst_44 = arith.constant dense<0.000000e+00> : vector<1x256xf32>
    %49 = tpu.matmul %39, %48, %cst_44 {dimension_numbers = #tpu.dot_dimension_numbers<[1], [0], [0], [1], [0, 0, 1, 1], [], []>} : vector<1x128xf32>, vector<128x256xf32>, vector<1x256xf32> -> vector<1x256xf32>
    %50 = arith.addf %46, %49 : vector<1x256xf32>
    %51 = vector.broadcast %42 : vector<1x1xf32> to vector<1x256xf32>
    %52 = arith.divf %50, %51 : vector<1x256xf32>
    %c0_45 = arith.constant 0 : index
    %c0_46 = arith.constant 0 : index
    %c0_47 = arith.constant 0 : index
    %c0_48 = arith.constant 0 : index
    %53 = vector.load %arg10[%c0_45, %c0_46, %c0_47, %c0_48] : memref<1x1x1x256xf32, #tpu.memory_space<vmem>>, vector<1x1x1x256xf32>
    %54 = vector.shape_cast %53 : vector<1x1x1x256xf32> to vector<1x256xf32>
    %55 = vector.shape_cast %52 : vector<1x256xf32> to vector<1x1x1x256xf32>
    tpu.vector_store %arg10[%c0_45, %c0_46, %c0_47, %c0_48], %55 {strides = array<i32>} : memref<1x1x1x256xf32, #tpu.memory_space<vmem>>, vector<1x1x1x256xf32>,
    return
  }
  func.func @transform_0(%arg0: i32, %arg1: i32) -> (i32, i32) {
    %c0_i32 = arith.constant 0 : i32
    %c0_i32_0 = arith.constant 0 : i32
    %c0_i32_1 = arith.constant 0 : i32
    return %c0_i32, %c0_i32_0 : i32, i32
  }
  func.func @transform_1(%arg0: i32, %arg1: i32) -> (i32, i32) {
    %c0_i32 = arith.constant 0 : i32
    %c0_i32_0 = arith.constant 0 : i32
    %c0_i32_1 = arith.constant 0 : i32
    return %c0_i32, %c0_i32_0 : i32, i32
  }
  func.func @transform_2(%arg0: i32, %arg1: i32) -> (i32, i32, i32, i32) {
    %c0_i32 = arith.constant 0 : i32
    %c0_i32_0 = arith.constant 0 : i32
    %c0_i32_1 = arith.constant 0 : i32
    return %arg0, %arg1, %c0_i32, %c0_i32_0 : i32, i32, i32, i32
  }
  func.func @transform_3(%arg0: i32, %arg1: i32) -> (i32, i32, i32, i32) {
    %c0_i32 = arith.constant 0 : i32
    %c0_i32_0 = arith.constant 0 : i32
    %c0_i32_1 = arith.constant 0 : i32
    return %arg0, %arg1, %c0_i32, %c0_i32_0 : i32, i32, i32, i32
  }
  func.func @transform_4(%arg0: i32, %arg1: i32) -> (i32, i32, i32, i32) {
    %c0_i32 = arith.constant 0 : i32
    %c0_i32_0 = arith.constant 0 : i32
    %c0_i32_1 = arith.constant 0 : i32
    return %arg0, %arg1, %c0_i32, %c0_i32_0 : i32, i32, i32, i32
  }
  func.func @transform_5(%arg0: i32, %arg1: i32) -> (i32, i32, i32, i32) {
    %c0_i32 = arith.constant 0 : i32
    %c0_i32_0 = arith.constant 0 : i32
    %c0_i32_1 = arith.constant 0 : i32
    return %arg0, %arg1, %c0_i32, %c0_i32_0 : i32, i32, i32, i32
  }
  func.func @transform_6(%arg0: i32, %arg1: i32) -> (i32, i32, i32, i32) {
    %c0_i32 = arith.constant 0 : i32
    %c0_i32_0 = arith.constant 0 : i32
    %c0_i32_1 = arith.constant 0 : i32
    return %arg0, %arg1, %c0_i32, %c0_i32_0 : i32, i32, i32, i32
  }
  func.func @transform_7(%arg0: i32, %arg1: i32) -> (i32, i32, i32, i32) {
    %c0_i32 = arith.constant 0 : i32
    %c0_i32_0 = arith.constant 0 : i32
    %c0_i32_1 = arith.constant 0 : i32
    return %arg0, %arg1, %c0_i32, %c0_i32_0 : i32, i32, i32, i32
  }
  func.func @transform_8(%arg0: i32, %arg1: i32) -> (i32, i32, i32, i32) {
    %c0_i32 = arith.constant 0 : i32
    %c0_i32_0 = arith.constant 0 : i32
    %c0_i32_1 = arith.constant 0 : i32
    return %arg0, %arg1, %c0_i32, %c0_i32_0 : i32, i32, i32, i32
  }
  func.func @transform_9(%arg0: i32, %arg1: i32) -> (i32, i32, i32, i32) {
    %c0_i32 = arith.constant 0 : i32
    %c0_i32_0 = arith.constant 0 : i32
    %c0_i32_1 = arith.constant 0 : i32
    return %arg0, %arg1, %c0_i32, %c0_i32_0 : i32, i32, i32, i32
  }
}

</mosaic_0001>

<llo_original>
// kernel: rope_gen_orca_forward.1
$region0: #{rope_gen_orca_forward.1}
  #allocation0 [shape = 'u32[]', space=smem, size = 0x4, offset = 0x4, fixed_abs, tag = 'smem constant byte address 0x4 - core index']
  #allocation1 [shape = 'u32[144,128]{1,0:T(1,128)}', space=vmem, size = 0x12000, scoped, tag = 'internal scratch']
  %s0 = inlined_call_operand.vmem [shape: f32[1,128], index: 0, kind: input, shape index: {}]
  %s1 = inlined_call_operand.vmem [shape: f32[128,1], index: 1, kind: input, shape index: {}]
  %s2 = inlined_call_operand.vmem [shape: f32[2,2,1,128], index: 2, kind: input, shape index: {}]
  %s3 = inlined_call_operand.vmem [shape: f32[2,2,1,128], index: 3, kind: input, shape index: {}]
  %s4 = inlined_call_operand.vmem [shape: f32[2,2,128,1], index: 4, kind: input, shape index: {}]
  %s5 = inlined_call_operand.vmem [shape: f32[2,2,1,256], index: 5, kind: input, shape index: {}]
  %s6 = inlined_call_operand.hbm [shape: f32[2,2,256,128], index: 6, kind: input, shape index: {}]
  %s7 = inlined_call_operand.hbm [shape: f32[2,2,128,256], index: 7, kind: input, shape index: {}]
  %s8 = inlined_call_operand.vmem [shape: f32[2,2,1,256], index: 8, kind: output, shape index: {0}]
  %s9 = inlined_call_operand.vmem [shape: f32[2,2,256,1], index: 9, kind: output, shape index: {1}]
  %10 = xla_tuple %s8, %s9
  %s11 = sld [smem:[#allocation0]]
  $region81: #{rope_gen_orca_forward.1} parent=0
    _
  %s13 = ssub.s32 1, %s11
  %s14 = scalar_select 0, %s13, %s11
  $region1: #{rope_gen_orca_forward.1} parent=0
    #allocation2 [shape = 'u8[262144]{0}', space=vmem, size = 0x40000, scoped, tag = 'input window, operand 6']
    #allocation3 [shape = 's32[2]{0}', space=sflag, size = 0x8, scoped, tag = 'scoped memory for rope_gen_orca_forward.1']
    #allocation4 [shape = 'u8[262144]{0}', space=vmem, size = 0x40000, scoped, tag = 'input window, operand 7']
    #allocation5 [shape = 's32[2]{0}', space=sflag, size = 0x8, scoped, tag = 'scoped memory for rope_gen_orca_forward.1']
    %15 = vsyncpa [#allocation3], 0
    %s16 = scalar_lea.sflag [#allocation3], 1
    %17 = vsyncpa %s16, 0
    %18 = vsyncpa [#allocation5], 0
    %s19 = scalar_lea.sflag [#allocation5], 1
    %20 = vsyncpa %s19, 0
    loop: start=0, step=1, limit=6
    $region2: #{rope_gen_orca_forward.1} parent=1 // loop_pre_header
      _
    $region3: #{rope_gen_orca_forward.1} parent=1 // loop_header
      %s22 = sphi 0, %s26
      %p23 = scmp.ge.s32.totalorder %s22, 6
      %s29 = sphi 0, %s41
      %s30 = sphi 0, %s37
      %s31 = sphi 0, %s29
      %s32 = sphi 0, %s30
      %s33 = sphi 0, %s31
      %s34 = sphi 0, %s32
      %s42 = sphi 0, %s42
      %s44 = sphi 0, %s42
      %s45 = sphi 0, %s44
      %s59 = sphi 0, %s45
      %s63 = sphi 0, %s63
      %s65 = sphi 0, %s63
      %s66 = sphi 0, %s65
      %s80 = sphi 0, %s66
      %s88 = sphi 0, %s90
      %s91 = sphi 0, %s88
      %s92 = sphi 0, %s91
      %s108 = sphi 0, %s92
      %s116 = sphi 0, %s118
      %s119 = sphi 0, %s116
      %s120 = sphi 0, %s119
      %s136 = sphi 0, %s120
      %s144 = sphi 0, %s146
      %s147 = sphi 0, %s144
      %s148 = sphi 0, %s147
      %s164 = sphi 0, %s148
      %s172 = sphi 0, %s174
      %s175 = sphi 0, %s172
      %s176 = sphi 0, %s175
      %s192 = sphi 0, %s176
      %s200 = sphi 0, %s202
      %s203 = sphi 0, %s200
      %s204 = sphi 0, %s203
      %s220 = sphi 0, %s204
      %s228 = sphi 0, %s230
      %s231 = sphi 0, %s228
      %s232 = sphi 0, %s231
      %s248 = sphi 0, %s232
      %s256 = sphi 0, %s258
      %s259 = sphi 0, %s256
      %s260 = sphi 0, %s259
      %s276 = sphi 0, %s260
      %s284 = sphi 0, %s286
      %s287 = sphi 0, %s284
      %s288 = sphi 0, %s287
      %s304 = sphi 0, %s288
    $region4: #{rope_gen_orca_forward.1} parent=1 // loop_header_branch
      %25 = sbr.rel (%p23) target = $region8
    $region5: #{rope_gen_orca_forward.1} parent=1 // loop_body
      %s27 = ssub.s32 %s22, 1
      %s28 = ssub.s32 %s22, 2
      %s35 = sadd.s32 1, %s30
      %p36 = scmp.ge.s32.totalorder %s35, 2
      %s37 = scalar_select %p36, 0, %s35
      %s38 = sadd.s32 1, %s29
      %s39 = scalar_select %p36, %s38, %s29
      %p40 = scmp.ge.s32.totalorder %s39, 2
      %s41 = scalar_select %p40, 0, %s39
      %s43 = sadd.s32 %s42, 1
      %p46 = scmp.eq.s32.totalorder %s22, 3
      %p47 = scmp.ne.s32.totalorder %s42, %s44
      %p48 = scmp.eq.s32.totalorder %s22, 0
      %p49 = por %p47, %p48
      %p50 = scmp.ne.s32.totalorder %s42, %s44
      %p51 = scmp.eq.s32.totalorder %s27, 3
      %p52 = por %p50, %p51
      %p53 = scmp.ne.s32.totalorder %s44, %s45
      %p54 = scmp.eq.s32.totalorder %s27, 0
      %p55 = por %p53, %p54
      %p56 = scmp.ne.s32.totalorder %s44, %s45
      %p57 = scmp.eq.s32.totalorder %s28, 3
      %p58 = por %p56, %p57
      %p60 = scmp.ne.s32.totalorder %s45, %s59
      %p61 = scmp.eq.s32.totalorder %s28, 0
      %p62 = por %p60, %p61
      %s64 = sadd.s32 %s63, 1
      %p67 = scmp.eq.s32.totalorder %s22, 3
      %p68 = scmp.ne.s32.totalorder %s63, %s65
      %p69 = scmp.eq.s32.totalorder %s22, 0
      %p70 = por %p68, %p69
      %p71 = scmp.ne.s32.totalorder %s63, %s65
      %p72 = scmp.eq.s32.totalorder %s27, 3
      %p73 = por %p71, %p72
      %p74 = scmp.ne.s32.totalorder %s65, %s66
      %p75 = scmp.eq.s32.totalorder %s27, 0
      %p76 = por %p74, %p75
      %p77 = scmp.ne.s32.totalorder %s65, %s66
      %p78 = scmp.eq.s32.totalorder %s28, 3
      %p79 = por %p77, %p78
      %p81 = scmp.ne.s32.totalorder %s66, %s80
      %p82 = scmp.eq.s32.totalorder %s28, 0
      %p83 = por %p81, %p82
      %s84 = ssub.s32 %s29, %s41
      %s85 = ssub.s32 %s30, %s37
      %s86 = sor.u32 %s84, %s85
      %p87 = scmp.eq.s32.totalorder %s86, 0
      %s89 = sadd.s32 %s88, 1
      %s90 = scalar_select %p87, %s88, %s89
      %p93 = pneg %p87
      %p94 = scmp.eq.s32.totalorder %s22, 3
      %p95 = por %p93, %p94
      %p96 = scmp.ne.s32.totalorder %s88, %s91
      %p97 = scmp.eq.s32.totalorder %s22, 0
      %p98 = por %p96, %p97
      %p99 = scmp.ne.s32.totalorder %s88, %s91
      %p100 = scmp.eq.s32.totalorder %s27, 3
      %p101 = por %p99, %p100
      %p102 = scmp.ne.s32.totalorder %s91, %s92
      %p103 = scmp.eq.s32.totalorder %s27, 0
      %p104 = por %p102, %p103
      %p105 = scmp.ne.s32.totalorder %s91, %s92
      %p106 = scmp.eq.s32.totalorder %s28, 3
      %p107 = por %p105, %p106
      %p109 = scmp.ne.s32.totalorder %s92, %s108
      %p110 = scmp.eq.s32.totalorder %s28, 0
      %p111 = por %p109, %p110
      %s112 = ssub.s32 %s29, %s41
      %s113 = ssub.s32 %s30, %s37
      %s114 = sor.u32 %s112, %s113
      %p115 = scmp.eq.s32.totalorder %s114, 0
      %s117 = sadd.s32 %s116, 1
      %s118 = scalar_select %p115, %s116, %s117
      %p121 = pneg %p115
      %p122 = scmp.eq.s32.totalorder %s22, 3
      %p123 = por %p121, %p122
      %p124 = scmp.ne.s32.totalorder %s116, %s119
      %p125 = scmp.eq.s32.totalorder %s22, 0
      %p126 = por %p124, %p125
      %p127 = scmp.ne.s32.totalorder %s116, %s119
      %p128 = scmp.eq.s32.totalorder %s27, 3
      %p129 = por %p127, %p128
      %p130 = scmp.ne.s32.totalorder %s119, %s120
      %p131 = scmp.eq.s32.totalorder %s27, 0
      %p132 = por %p130, %p131
      %p133 = scmp.ne.s32.totalorder %s119, %s120
      %p134 = scmp.eq.s32.totalorder %s28, 3
      %p135 = por %p133, %p134
      %p137 = scmp.ne.s32.totalorder %s120, %s136
      %p138 = scmp.eq.s32.totalorder %s28, 0
      %p139 = por %p137, %p138
      %s140 = ssub.s32 %s29, %s41
      %s141 = ssub.s32 %s30, %s37
      %s142 = sor.u32 %s140, %s141
      %p143 = scmp.eq.s32.totalorder %s142, 0
      %s145 = sadd.s32 %s144, 1
      %s146 = scalar_select %p143, %s144, %s145
      %p149 = pneg %p143
      %p150 = scmp.eq.s32.totalorder %s22, 3
      %p151 = por %p149, %p150
      %p152 = scmp.ne.s32.totalorder %s144, %s147
      %p153 = scmp.eq.s32.totalorder %s22, 0
      %p154 = por %p152, %p153
      %p155 = scmp.ne.s32.totalorder %s144, %s147
      %p156 = scmp.eq.s32.totalorder %s27, 3
      %p157 = por %p155, %p156
      %p158 = scmp.ne.s32.totalorder %s147, %s148
      %p159 = scmp.eq.s32.totalorder %s27, 0
      %p160 = por %p158, %p159
      %p161 = scmp.ne.s32.totalorder %s147, %s148
      %p162 = scmp.eq.s32.totalorder %s28, 3
      %p163 = por %p161, %p162
      %p165 = scmp.ne.s32.totalorder %s148, %s164
      %p166 = scmp.eq.s32.totalorder %s28, 0
      %p167 = por %p165, %p166
      %s168 = ssub.s32 %s29, %s41
      %s169 = ssub.s32 %s30, %s37
      %s170 = sor.u32 %s168, %s169
      %p171 = scmp.eq.s32.totalorder %s170, 0
      %s173 = sadd.s32 %s172, 1
      %s174 = scalar_select %p171, %s172, %s173
      %p177 = pneg %p171
      %p178 = scmp.eq.s32.totalorder %s22, 3
      %p179 = por %p177, %p178
      %p180 = scmp.ne.s32.totalorder %s172, %s175
      %p181 = scmp.eq.s32.totalorder %s22, 0
      %p182 = por %p180, %p181
      %p183 = scmp.ne.s32.totalorder %s172, %s175
      %p184 = scmp.eq.s32.totalorder %s27, 3
      %p185 = por %p183, %p184
      %p186 = scmp.ne.s32.totalorder %s175, %s176
      %p187 = scmp.eq.s32.totalorder %s27, 0
      %p188 = por %p186, %p187
      %p189 = scmp.ne.s32.totalorder %s175, %s176
      %p190 = scmp.eq.s32.totalorder %s28, 3
      %p191 = por %p189, %p190
      %p193 = scmp.ne.s32.totalorder %s176, %s192
      %p194 = scmp.eq.s32.totalorder %s28, 0
      %p195 = por %p193, %p194
      %s196 = ssub.s32 %s29, %s41
      %s197 = ssub.s32 %s30, %s37
      %s198 = sor.u32 %s196, %s197
      %p199 = scmp.eq.s32.totalorder %s198, 0
      %s201 = sadd.s32 %s200, 1
      %s202 = scalar_select %p199, %s200, %s201
      %p205 = pneg %p199
      %p206 = scmp.eq.s32.totalorder %s22, 3
      %p207 = por %p205, %p206
      %p208 = scmp.ne.s32.totalorder %s200, %s203
      %p209 = scmp.eq.s32.totalorder %s22, 0
      %p210 = por %p208, %p209
      %p211 = scmp.ne.s32.totalorder %s200, %s203
      %p212 = scmp.eq.s32.totalorder %s27, 3
      %p213 = por %p211, %p212
      %p214 = scmp.ne.s32.totalorder %s203, %s204
      %p215 = scmp.eq.s32.totalorder %s27, 0
      %p216 = por %p214, %p215
      %p217 = scmp.ne.s32.totalorder %s203, %s204
      %p218 = scmp.eq.s32.totalorder %s28, 3
      %p219 = por %p217, %p218
      %p221 = scmp.ne.s32.totalorder %s204, %s220
      %p222 = scmp.eq.s32.totalorder %s28, 0
      %p223 = por %p221, %p222
      %s224 = ssub.s32 %s29, %s41
      %s225 = ssub.s32 %s30, %s37
      %s226 = sor.u32 %s224, %s225
      %p227 = scmp.eq.s32.totalorder %s226, 0
      %s229 = sadd.s32 %s228, 1
      %s230 = scalar_select %p227, %s228, %s229
      %p233 = pneg %p227
      %p234 = scmp.eq.s32.totalorder %s22, 3
      %p235 = por %p233, %p234
      %p236 = scmp.ne.s32.totalorder %s228, %s231
      %p237 = scmp.eq.s32.totalorder %s22, 0
      %p238 = por %p236, %p237
      %p239 = scmp.ne.s32.totalorder %s228, %s231
      %p240 = scmp.eq.s32.totalorder %s27, 3
      %p241 = por %p239, %p240
      %p242 = scmp.ne.s32.totalorder %s231, %s232
      %p243 = scmp.eq.s32.totalorder %s27, 0
      %p244 = por %p242, %p243
      %p245 = scmp.ne.s32.totalorder %s231, %s232
      %p246 = scmp.eq.s32.totalorder %s28, 3
      %p247 = por %p245, %p246
      %p249 = scmp.ne.s32.totalorder %s232, %s248
      %p250 = scmp.eq.s32.totalorder %s28, 0
      %p251 = por %p249, %p250
      %s252 = ssub.s32 %s29, %s41
      %s253 = ssub.s32 %s30, %s37
      %s254 = sor.u32 %s252, %s253
      %p255 = scmp.eq.s32.totalorder %s254, 0
      %s257 = sadd.s32 %s256, 1
      %s258 = scalar_select %p255, %s256, %s257
      %p261 = pneg %p255
      %p262 = scmp.eq.s32.totalorder %s22, 3
      %p263 = por %p261, %p262
      %p264 = scmp.ne.s32.totalorder %s256, %s259
      %p265 = scmp.eq.s32.totalorder %s22, 0
      %p266 = por %p264, %p265
      %p267 = scmp.ne.s32.totalorder %s256, %s259
      %p268 = scmp.eq.s32.totalorder %s27, 3
      %p269 = por %p267, %p268
      %p270 = scmp.ne.s32.totalorder %s259, %s260
      %p271 = scmp.eq.s32.totalorder %s27, 0
      %p272 = por %p270, %p271
      %p273 = scmp.ne.s32.totalorder %s259, %s260
      %p274 = scmp.eq.s32.totalorder %s28, 3
      %p275 = por %p273, %p274
      %p277 = scmp.ne.s32.totalorder %s260, %s276
      %p278 = scmp.eq.s32.totalorder %s28, 0
      %p279 = por %p277, %p278
      %s280 = ssub.s32 %s29, %s41
      %s281 = ssub.s32 %s30, %s37
      %s282 = sor.u32 %s280, %s281
      %p283 = scmp.eq.s32.totalorder %s282, 0
      %s285 = sadd.s32 %s284, 1
      %s286 = scalar_select %p283, %s284, %s285
      %p289 = pneg %p283
      %p290 = scmp.eq.s32.totalorder %s22, 3
      %p291 = por %p289, %p290
      %p292 = scmp.ne.s32.totalorder %s284, %s287
      %p293 = scmp.eq.s32.totalorder %s22, 0
      %p294 = por %p292, %p293
      %p295 = scmp.ne.s32.totalorder %s284, %s287
      %p296 = scmp.eq.s32.totalorder %s27, 3
      %p297 = por %p295, %p296
      %p298 = scmp.ne.s32.totalorder %s287, %s288
      %p299 = scmp.eq.s32.totalorder %s27, 0
      %p300 = por %p298, %p299
      %p301 = scmp.ne.s32.totalorder %s287, %s288
      %p302 = scmp.eq.s32.totalorder %s28, 3
      %p303 = por %p301, %p302
      %p305 = scmp.ne.s32.totalorder %s288, %s304
      %p306 = scmp.eq.s32.totalorder %s28, 0
      %p307 = por %p305, %p306
      %p308 = scmp.le.s32.totalorder 1, %s22
      %p309 = scmp.lt.s32.totalorder %s22, 5
      %p310 = pnand %p308, %p309
      %p311 = pneg %p310
      // Predicated region
      $region9: #{rope_gen_orca_forward.1} parent=5 // pred_check
        _
      $region10: #{rope_gen_orca_forward.1} parent=5 // pred_check_branch
        %313 = sbr.rel (%p310) target = $region12
      $region11: #{rope_gen_orca_forward.1} parent=5 // pred_region
        %s314 = ssub.s32 %s22, 1
        // Predicated region
        $region13: #{rope_gen_orca_forward.1} parent=11 // pred_check
          %p315 = pneg %p55
        $region14: #{rope_gen_orca_forward.1} parent=11 // pred_check_branch
          %317 = sbr.rel (%p315) target = $region16
        $region15: #{rope_gen_orca_forward.1} parent=11 // pred_region
          _
        $region16: #{rope_gen_orca_forward.1} parent=11 // pred_fallthru
          _
        // Predicated region
        $region17: #{rope_gen_orca_forward.1} parent=11 // pred_check
          %p318 = pneg %p76
        $region18: #{rope_gen_orca_forward.1} parent=11 // pred_check_branch
          %320 = sbr.rel (%p318) target = $region20
        $region19: #{rope_gen_orca_forward.1} parent=11 // pred_region
          _
        $region20: #{rope_gen_orca_forward.1} parent=11 // pred_fallthru
          _
      $region12: #{rope_gen_orca_forward.1} parent=5 // pred_fallthru
        _
      %p321 = scmp.lt.s32.totalorder %s22, 4
      // Predicated region
      $region21: #{rope_gen_orca_forward.1} parent=5 // pred_check
        %p322 = pneg %p321
      $region22: #{rope_gen_orca_forward.1} parent=5 // pred_check_branch
        %324 = sbr.rel (%p322) target = $region24
      $region23: #{rope_gen_orca_forward.1} parent=5 // pred_region
        // Predicated region
        $region25: #{rope_gen_orca_forward.1} parent=23 // pred_check
          %p325 = pneg %p98
        $region26: #{rope_gen_orca_forward.1} parent=23 // pred_check_branch
          %327 = sbr.rel (%p325) target = $region28
        $region27: #{rope_gen_orca_forward.1} parent=23 // pred_region
          %p328 = scmp.lt.s32.totalorder %s29, 1
          %s329 = scalar_select %p328, %s29, 1
          %p330 = scmp.lt.s32.totalorder %s30, 1
          %s331 = scalar_select %p330, %s30, 1
          %s332 = smul.addr %s329, 2
          %s333 = sadd.s32 %s331, %s332
          %s334 = scalar_lea.vmem %s2, %s333
        $region28: #{rope_gen_orca_forward.1} parent=23 // pred_fallthru
          _
        // Predicated region
        $region29: #{rope_gen_orca_forward.1} parent=23 // pred_check
          %p335 = pneg %p126
        $region30: #{rope_gen_orca_forward.1} parent=23 // pred_check_branch
          %337 = sbr.rel (%p335) target = $region32
        $region31: #{rope_gen_orca_forward.1} parent=23 // pred_region
          %p338 = scmp.lt.s32.totalorder %s29, 1
          %s339 = scalar_select %p338, %s29, 1
          %p340 = scmp.lt.s32.totalorder %s30, 1
          %s341 = scalar_select %p340, %s30, 1
          %s342 = smul.addr %s339, 2
          %s343 = sadd.s32 %s341, %s342
          %s344 = scalar_lea.vmem %s3, %s343
        $region32: #{rope_gen_orca_forward.1} parent=23 // pred_fallthru
          _
        // Predicated region
        $region33: #{rope_gen_orca_forward.1} parent=23 // pred_check
          %p345 = pneg %p154
        $region34: #{rope_gen_orca_forward.1} parent=23 // pred_check_branch
          %347 = sbr.rel (%p345) target = $region36
        $region35: #{rope_gen_orca_forward.1} parent=23 // pred_region
          %p348 = scmp.lt.s32.totalorder %s29, 1
          %s349 = scalar_select %p348, %s29, 1
          %p350 = scmp.lt.s32.totalorder %s30, 1
          %s351 = scalar_select %p350, %s30, 1
          %s352 = smul.addr %s351, 16
          %s353 = smul.addr %s349, 32
          %s354 = sadd.s32 %s352, %s353
          %s355 = smul.addr %s354, 8
          %s356 = scalar_lea.vmem %s4, %s355
        $region36: #{rope_gen_orca_forward.1} parent=23 // pred_fallthru
          _
        // Predicated region
        $region37: #{rope_gen_orca_forward.1} parent=23 // pred_check
          %p357 = pneg %p182
        $region38: #{rope_gen_orca_forward.1} parent=23 // pred_check_branch
          %359 = sbr.rel (%p357) target = $region40
        $region39: #{rope_gen_orca_forward.1} parent=23 // pred_region
          %p360 = scmp.lt.s32.totalorder %s29, 1
          %s361 = scalar_select %p360, %s29, 1
          %p362 = scmp.lt.s32.totalorder %s30, 1
          %s363 = scalar_select %p362, %s30, 1
          %s364 = smul.addr %s363, 2
          %s365 = smul.addr %s361, 4
          %s366 = sadd.s32 %s364, %s365
          %s367 = scalar_lea.vmem %s5, %s366
        $region40: #{rope_gen_orca_forward.1} parent=23 // pred_fallthru
          _
        // Predicated region
        $region41: #{rope_gen_orca_forward.1} parent=23 // pred_check
          %p368 = pneg %p210
        $region42: #{rope_gen_orca_forward.1} parent=23 // pred_check_branch
          %370 = sbr.rel (%p368) target = $region44
        $region43: #{rope_gen_orca_forward.1} parent=23 // pred_region
          %s371 = sand.u32 %s200, 1
          %s372 = scalar_lea.sflag [#allocation3], %s371
          %s373 = sand.u32 %s200, 1
          %s374 = smul.addr %s373, 256
          %s375 = scalar_lea.vmem [#allocation2], %s374
          %s377 = ssub.s32 4096, 4096
          %378 = vsyncadd %s372, %s377
          %s379 = smul.addr %s30, 32
          %s380 = smul.addr %s29, 64
          %s381 = sadd.s32 %s379, %s380
          %s382 = smul.addr %s381, 128
          %s383 = scalar_lea.hbm %s6, %s382
          %s384 = sshll.u32 %s375, 4
          %s385 = int_to_ptr.vmem [resolvable:$true] %s384
          %390 = dma.hbm_to_vmem [thread:$0]  %s383, 4096, %s385, %s372, 128, 128, 8
        $region44: #{rope_gen_orca_forward.1} parent=23 // pred_fallthru
          _
        // Predicated region
        $region45: #{rope_gen_orca_forward.1} parent=23 // pred_check
          %p391 = pneg %p238
        $region46: #{rope_gen_orca_forward.1} parent=23 // pred_check_branch
          %393 = sbr.rel (%p391) target = $region48
        $region47: #{rope_gen_orca_forward.1} parent=23 // pred_region
          %s394 = sand.u32 %s228, 1
          %s395 = scalar_lea.sflag [#allocation5], %s394
          %s396 = sand.u32 %s228, 1
          %s397 = smul.addr %s396, 256
          %s398 = scalar_lea.vmem [#allocation4], %s397
          %s400 = ssub.s32 4096, 4096
          %401 = vsyncadd %s395, %s400
          %s402 = smul.addr %s30, 32
          %s403 = smul.addr %s29, 64
          %s404 = sadd.s32 %s402, %s403
          %s405 = smul.addr %s404, 128
          %s406 = scalar_lea.hbm %s7, %s405
          %s407 = sshll.u32 %s398, 4
          %s408 = int_to_ptr.vmem [resolvable:$true] %s407
          %413 = dma.hbm_to_vmem [thread:$0]  %s406, 4096, %s408, %s395, 256, 256, 16
        $region48: #{rope_gen_orca_forward.1} parent=23 // pred_fallthru
          _
      $region24: #{rope_gen_orca_forward.1} parent=5 // pred_fallthru
        _
      %p414 = scmp.le.s32.totalorder 1, %s22
      %p415 = scmp.lt.s32.totalorder %s22, 5
      %p416 = pnand %p414, %p415
      %p417 = pneg %p416
      // Predicated region
      $region49: #{rope_gen_orca_forward.1} parent=5 // pred_check
        _
      $region50: #{rope_gen_orca_forward.1} parent=5 // pred_check_branch
        %419 = sbr.rel (%p416) target = $region52
      $region51: #{rope_gen_orca_forward.1} parent=5 // pred_region
        %s420 = ssub.s32 %s22, 1
        %s421 = sand.u32 %s203, 1
        %s422 = scalar_lea.sflag [#allocation3], %s421
        %s423 = sand.u32 %s203, 1
        %s424 = smul.addr %s423, 256
        %s425 = scalar_lea.vmem [#allocation2], %s424
        // Predicated region
        $region53: #{rope_gen_orca_forward.1} parent=51 // pred_check
          %p426 = pneg %p216
        $region54: #{rope_gen_orca_forward.1} parent=51 // pred_check_branch
          %428 = sbr.rel (%p426) target = $region56
        $region55: #{rope_gen_orca_forward.1} parent=51 // pred_region
          %429 = dma.done %s422, 4096
        $region56: #{rope_gen_orca_forward.1} parent=51 // pred_fallthru
          _
        %s430 = sand.u32 %s231, 1
        %s431 = scalar_lea.sflag [#allocation5], %s430
        %s432 = sand.u32 %s231, 1
        %s433 = smul.addr %s432, 256
        %s434 = scalar_lea.vmem [#allocation4], %s433
        // Predicated region
        $region57: #{rope_gen_orca_forward.1} parent=51 // pred_check
          %p435 = pneg %p244
        $region58: #{rope_gen_orca_forward.1} parent=51 // pred_check_branch
          %437 = sbr.rel (%p435) target = $region60
        $region59: #{rope_gen_orca_forward.1} parent=51 // pred_region
          %438 = dma.done %s431, 4096
        $region60: #{rope_gen_orca_forward.1} parent=51 // pred_fallthru
          _
        %p439 = pneg %p55
        %p440 = pneg %p52
        %p441 = pneg %p76
        %p442 = pneg %p73
        %p443 = scmp.lt.s32.totalorder %s31, 1
        %s444 = scalar_select %p443, %s31, 1
        %p445 = scmp.lt.s32.totalorder %s32, 1
        %s446 = scalar_select %p445, %s32, 1
        %s447 = smul.addr %s444, 2
        %s448 = sadd.s32 %s446, %s447
        %s449 = scalar_lea.vmem %s2, %s448
        %p450 = pneg %p104
        %p451 = pneg %p101
        %p452 = scmp.lt.s32.totalorder %s31, 1
        %s453 = scalar_select %p452, %s31, 1
        %p454 = scmp.lt.s32.totalorder %s32, 1
        %s455 = scalar_select %p454, %s32, 1
        %s456 = smul.addr %s453, 2
        %s457 = sadd.s32 %s455, %s456
        %s458 = scalar_lea.vmem %s3, %s457
        %p459 = pneg %p132
        %p460 = pneg %p129
        %p461 = scmp.lt.s32.totalorder %s31, 1
        %s462 = scalar_select %p461, %s31, 1
        %p463 = scmp.lt.s32.totalorder %s32, 1
        %s464 = scalar_select %p463, %s32, 1
        %s465 = smul.addr %s464, 16
        %s466 = smul.addr %s462, 32
        %s467 = sadd.s32 %s465, %s466
        %s468 = smul.addr %s467, 8
        %s469 = scalar_lea.vmem %s4, %s468
        %p470 = pneg %p160
        %p471 = pneg %p157
        %p472 = scmp.lt.s32.totalorder %s31, 1
        %s473 = scalar_select %p472, %s31, 1
        %p474 = scmp.lt.s32.totalorder %s32, 1
        %s475 = scalar_select %p474, %s32, 1
        %s476 = smul.addr %s475, 2
        %s477 = smul.addr %s473, 4
        %s478 = sadd.s32 %s476, %s477
        %s479 = scalar_lea.vmem %s5, %s478
        %p480 = pneg %p188
        %p481 = pneg %p185
        %s482 = sand.u32 %s203, 1
        %s483 = scalar_lea.sflag [#allocation3], %s482
        %s484 = sand.u32 %s203, 1
        %s485 = smul.addr %s484, 256
        %s486 = scalar_lea.vmem [#allocation2], %s485
        %p487 = pneg %p216
        %p488 = pneg %p213
        %s489 = sand.u32 %s231, 1
        %s490 = scalar_lea.sflag [#allocation5], %s489
        %s491 = sand.u32 %s231, 1
        %s492 = smul.addr %s491, 256
        %s493 = scalar_lea.vmem [#allocation4], %s492
        %p494 = pneg %p244
        %p495 = pneg %p241
        %p496 = pneg %p272
        %p497 = pneg %p269
        %p498 = scmp.lt.s32.totalorder %s31, 1
        %s499 = scalar_select %p498, %s31, 1
        %p500 = scmp.lt.s32.totalorder %s32, 1
        %s501 = scalar_select %p500, %s32, 1
        %s502 = smul.addr %s501, 2
        %s503 = smul.addr %s499, 4
        %s504 = sadd.s32 %s502, %s503
        %s505 = scalar_lea.vmem %s8, %s504
        %p506 = pneg %p300
        %p507 = pneg %p297
        %p508 = scmp.lt.s32.totalorder %s31, 1
        %s509 = scalar_select %p508, %s31, 1
        %p510 = scmp.lt.s32.totalorder %s32, 1
        %s511 = scalar_select %p510, %s32, 1
        %s512 = smul.addr %s511, 32
        %s513 = smul.addr %s509, 64
        %s514 = sadd.s32 %s512, %s513
        %s515 = smul.addr %s514, 8
        %s516 = scalar_lea.vmem %s9, %s515
        %p517 = scmp.lt.s32.totalorder %s31, 1
        %s518 = scalar_select %p517, %s31, 1
        %p519 = scmp.lt.s32.totalorder %s32, 1
        %s520 = scalar_select %p519, %s32, 1
        %s521 = smul.addr %s518, 2
        %s522 = sadd.s32 %s520, %s521
        %s523 = scalar_lea.vmem %s2, %s522
        %p524 = scmp.lt.s32.totalorder %s31, 1
        %s525 = scalar_select %p524, %s31, 1
        %p526 = scmp.lt.s32.totalorder %s32, 1
        %s527 = scalar_select %p526, %s32, 1
        %s528 = smul.addr %s525, 2
        %s529 = sadd.s32 %s527, %s528
        %s530 = scalar_lea.vmem %s3, %s529
        %p531 = scmp.lt.s32.totalorder %s31, 1
        %s532 = scalar_select %p531, %s31, 1
        %p533 = scmp.lt.s32.totalorder %s32, 1
        %s534 = scalar_select %p533, %s32, 1
        %s535 = smul.addr %s534, 16
        %s536 = smul.addr %s532, 32
        %s537 = sadd.s32 %s535, %s536
        %s538 = smul.addr %s537, 8
        %s539 = scalar_lea.vmem %s4, %s538
        %p540 = scmp.lt.s32.totalorder %s31, 1
        %s541 = scalar_select %p540, %s31, 1
        %p542 = scmp.lt.s32.totalorder %s32, 1
        %s543 = scalar_select %p542, %s32, 1
        %s544 = smul.addr %s543, 2
        %s545 = smul.addr %s541, 4
        %s546 = sadd.s32 %s544, %s545
        %s547 = scalar_lea.vmem %s5, %s546
        %p548 = scmp.lt.s32.totalorder %s31, 1
        %s549 = scalar_select %p548, %s31, 1
        %p550 = scmp.lt.s32.totalorder %s32, 1
        %s551 = scalar_select %p550, %s32, 1
        %s552 = smul.addr %s551, 2
        %s553 = smul.addr %s549, 4
        %s554 = sadd.s32 %s552, %s553
        %s555 = scalar_lea.vmem %s8, %s554
        %p556 = scmp.lt.s32.totalorder %s31, 1
        %s557 = scalar_select %p556, %s31, 1
        %p558 = scmp.lt.s32.totalorder %s32, 1
        %s559 = scalar_select %p558, %s32, 1
        %s560 = smul.addr %s559, 32
        %s561 = smul.addr %s557, 64
        %s562 = sadd.s32 %s560, %s561
        %s563 = smul.addr %s562, 8
        %s564 = scalar_lea.vmem %s9, %s563
        %v565 = vld [vmem:[%s0] sm:$0x1]
        %v566 = vld [vmem:[%s523] sm:$0x1]
        %v567 = vmul.f32 %v566, %v565
        %v568 = vld [vmem:[%s530] sm:$0x1]
        %v569 = vmul.f32 %v568, %v565
        %v570 = vld [vmem:[%s539] sm:$0xff]
        %v571 = vld [vmem:[%s539 + $0x8] sm:$0xff]
        %v572 = vld [vmem:[%s539 + $0x10] sm:$0xff]
        %v573 = vld [vmem:[%s539 + $0x18] sm:$0xff]
        %v574 = vld [vmem:[%s539 + $0x20] sm:$0xff]
        %v575 = vld [vmem:[%s539 + $0x28] sm:$0xff]
        %v576 = vld [vmem:[%s539 + $0x30] sm:$0xff]
        %v577 = vld [vmem:[%s539 + $0x38] sm:$0xff]
        %v578 = vld [vmem:[%s539 + $0x40] sm:$0xff]
        %v579 = vld [vmem:[%s539 + $0x48] sm:$0xff]
        %v580 = vld [vmem:[%s539 + $0x50] sm:$0xff]
        %v581 = vld [vmem:[%s539 + $0x58] sm:$0xff]
        %v582 = vld [vmem:[%s539 + $0x60] sm:$0xff]
        %v583 = vld [vmem:[%s539 + $0x68] sm:$0xff]
        %v584 = vld [vmem:[%s539 + $0x70] sm:$0xff]
        %v585 = vld [vmem:[%s539 + $0x78] sm:$0xff]
        %v586 = vld [vmem:[%s1] sm:$0xff]
        %v587 = vld [vmem:[%s1 + $0x8] sm:$0xff]
        %v588 = vld [vmem:[%s1 + $0x10] sm:$0xff]
        %v589 = vld [vmem:[%s1 + $0x18] sm:$0xff]
        %v590 = vld [vmem:[%s1 + $0x20] sm:$0xff]
        %v591 = vld [vmem:[%s1 + $0x28] sm:$0xff]
        %v592 = vld [vmem:[%s1 + $0x30] sm:$0xff]
        %v593 = vld [vmem:[%s1 + $0x38] sm:$0xff]
        %v594 = vld [vmem:[%s1 + $0x40] sm:$0xff]
        %v595 = vld [vmem:[%s1 + $0x48] sm:$0xff]
        %v596 = vld [vmem:[%s1 + $0x50] sm:$0xff]
        %v597 = vld [vmem:[%s1 + $0x58] sm:$0xff]
        %v598 = vld [vmem:[%s1 + $0x60] sm:$0xff]
        %v599 = vld [vmem:[%s1 + $0x68] sm:$0xff]
        %v600 = vld [vmem:[%s1 + $0x70] sm:$0xff]
        %v601 = vld [vmem:[%s1 + $0x78] sm:$0xff]
        %v602 = vmul.f32 %v570, %v586
        %v603 = vmul.f32 %v571, %v587
        %v604 = vmul.f32 %v572, %v588
        %v605 = vmul.f32 %v573, %v589
        %v606 = vmul.f32 %v574, %v590
        %v607 = vmul.f32 %v575, %v591
        %v608 = vmul.f32 %v576, %v592
        %v609 = vmul.f32 %v577, %v593
        %v610 = vmul.f32 %v578, %v594
        %v611 = vmul.f32 %v579, %v595
        %v612 = vmul.f32 %v580, %v596
        %v613 = vmul.f32 %v581, %v597
        %v614 = vmul.f32 %v582, %v598
        %v615 = vmul.f32 %v583, %v599
        %v616 = vmul.f32 %v584, %v600
        %v617 = vmul.f32 %v585, %v601
        %vm618 = vcmask 7168
        %619 = vst.msk [vmem:[%s564] sm:$0xff] %vm618, %v602
        %620 = vst.msk [vmem:[%s564 + $0x8] sm:$0xff] %vm618, %v603
        %621 = vst.msk [vmem:[%s564 + $0x10] sm:$0xff] %vm618, %v604
        %622 = vst.msk [vmem:[%s564 + $0x18] sm:$0xff] %vm618, %v605
        %623 = vst.msk [vmem:[%s564 + $0x20] sm:$0xff] %vm618, %v606
        %624 = vst.msk [vmem:[%s564 + $0x28] sm:$0xff] %vm618, %v607
        %625 = vst.msk [vmem:[%s564 + $0x30] sm:$0xff] %vm618, %v608
        %626 = vst.msk [vmem:[%s564 + $0x38] sm:$0xff] %vm618, %v609
        %627 = vst.msk [vmem:[%s564 + $0x40] sm:$0xff] %vm618, %v610
        %628 = vst.msk [vmem:[%s564 + $0x48] sm:$0xff] %vm618, %v611
        %629 = vst.msk [vmem:[%s564 + $0x50] sm:$0xff] %vm618, %v612
        %630 = vst.msk [vmem:[%s564 + $0x58] sm:$0xff] %vm618, %v613
        %631 = vst.msk [vmem:[%s564 + $0x60] sm:$0xff] %vm618, %v614
        %632 = vst.msk [vmem:[%s564 + $0x68] sm:$0xff] %vm618, %v615
        %633 = vst.msk [vmem:[%s564 + $0x70] sm:$0xff] %vm618, %v616
        %634 = vst.msk [vmem:[%s564 + $0x78] sm:$0xff] %vm618, %v617
        %635 = vst.msk [vmem:[%s564 + $0x80] sm:$0xff] %vm618, %v602
        %636 = vst.msk [vmem:[%s564 + $0x88] sm:$0xff] %vm618, %v603
        %637 = vst.msk [vmem:[%s564 + $0x90] sm:$0xff] %vm618, %v604
        %638 = vst.msk [vmem:[%s564 + $0x98] sm:$0xff] %vm618, %v605
        %639 = vst.msk [vmem:[%s564 + $0xa0] sm:$0xff] %vm618, %v606
        %640 = vst.msk [vmem:[%s564 + $0xa8] sm:$0xff] %vm618, %v607
        %641 = vst.msk [vmem:[%s564 + $0xb0] sm:$0xff] %vm618, %v608
        %642 = vst.msk [vmem:[%s564 + $0xb8] sm:$0xff] %vm618, %v609
        %643 = vst.msk [vmem:[%s564 + $0xc0] sm:$0xff] %vm618, %v610
        %644 = vst.msk [vmem:[%s564 + $0xc8] sm:$0xff] %vm618, %v611
        %645 = vst.msk [vmem:[%s564 + $0xd0] sm:$0xff] %vm618, %v612
        %646 = vst.msk [vmem:[%s564 + $0xd8] sm:$0xff] %vm618, %v613
        %647 = vst.msk [vmem:[%s564 + $0xe0] sm:$0xff] %vm618, %v614
        %648 = vst.msk [vmem:[%s564 + $0xe8] sm:$0xff] %vm618, %v615
        %649 = vst.msk [vmem:[%s564 + $0xf0] sm:$0xff] %vm618, %v616
        %650 = vst.msk [vmem:[%s564 + $0xf8] sm:$0xff] %vm618, %v617
        %v651 = vmul.f32 %v567, %v569
        %vm652 = vcmask 1040384
        %v653 = vsel %vm652, %v651, 0.0
        %654 = vadd.xlane.f32.xlu0 %v653
        %v655 = vpop.xlane.xlu0 %654
        %v656 = vmul.f32 %v655, 2.0
        %v657 = vmul.f32 %v656, 0.00390625
        %v658 = vld [vmem:[%s425] sm:$0xff]
        %v659 = vld [vmem:[%s425 + $0x8] sm:$0xff]
        %v660 = vld [vmem:[%s425 + $0x10] sm:$0xff]
        %v661 = vld [vmem:[%s425 + $0x18] sm:$0xff]
        %v662 = vld [vmem:[%s425 + $0x20] sm:$0xff]
        %v663 = vld [vmem:[%s425 + $0x28] sm:$0xff]
        %v664 = vld [vmem:[%s425 + $0x30] sm:$0xff]
        %v665 = vld [vmem:[%s425 + $0x38] sm:$0xff]
        %v666 = vld [vmem:[%s425 + $0x40] sm:$0xff]
        %v667 = vld [vmem:[%s425 + $0x48] sm:$0xff]
        %v668 = vld [vmem:[%s425 + $0x50] sm:$0xff]
        %v669 = vld [vmem:[%s425 + $0x58] sm:$0xff]
        %v670 = vld [vmem:[%s425 + $0x60] sm:$0xff]
        %v671 = vld [vmem:[%s425 + $0x68] sm:$0xff]
        %v672 = vld [vmem:[%s425 + $0x70] sm:$0xff]
        %v673 = vld [vmem:[%s425 + $0x78] sm:$0xff]
        %v674 = vld [vmem:[%s425 + $0x80] sm:$0xff]
        %v675 = vld [vmem:[%s425 + $0x88] sm:$0xff]
        %v676 = vld [vmem:[%s425 + $0x90] sm:$0xff]
        %v677 = vld [vmem:[%s425 + $0x98] sm:$0xff]
        %v678 = vld [vmem:[%s425 + $0xa0] sm:$0xff]
        %v679 = vld [vmem:[%s425 + $0xa8] sm:$0xff]
        %v680 = vld [vmem:[%s425 + $0xb0] sm:$0xff]
        %v681 = vld [vmem:[%s425 + $0xb8] sm:$0xff]
        %v682 = vld [vmem:[%s425 + $0xc0] sm:$0xff]
        %v683 = vld [vmem:[%s425 + $0xc8] sm:$0xff]
        %v684 = vld [vmem:[%s425 + $0xd0] sm:$0xff]
        %v685 = vld [vmem:[%s425 + $0xd8] sm:$0xff]
        %v686 = vld [vmem:[%s425 + $0xe0] sm:$0xff]
        %v687 = vld [vmem:[%s425 + $0xe8] sm:$0xff]
        %v688 = vld [vmem:[%s425 + $0xf0] sm:$0xff]
        %v689 = vld [vmem:[%s425 + $0xf8] sm:$0xff]
        %v690 = vadd.f32 %v658, %v674
        %v691 = vadd.f32 %v659, %v675
        %v692 = vadd.f32 %v660, %v676
        %v693 = vadd.f32 %v661, %v677
        %v694 = vadd.f32 %v662, %v678
        %v695 = vadd.f32 %v663, %v679
        %v696 = vadd.f32 %v664, %v680
        %v697 = vadd.f32 %v665, %v681
        %v698 = vadd.f32 %v666, %v682
        %v699 = vadd.f32 %v667, %v683
        %v700 = vadd.f32 %v668, %v684
        %v701 = vadd.f32 %v669, %v685
        %v702 = vadd.f32 %v670, %v686
        %v703 = vadd.f32 %v671, %v687
        %v704 = vadd.f32 %v672, %v688
        %v705 = vadd.f32 %v673, %v689
        %706 = vmatprep.subr.mxu0 0.0
        %707 = vmatpush1.msra.mxu0 %v690
        %708 = vmatprep.subr.mxu0 0.0
        %709 = vmatpush1.msra.mxu0 %v691
        %710 = vmatprep.subr.mxu0 0.0
        %711 = vmatpush1.msra.mxu0 %v692
        %712 = vmatprep.subr.mxu0 0.0
        %713 = vmatpush1.msra.mxu0 %v693
        %714 = vmatprep.subr.mxu0 0.0
        %715 = vmatpush1.msra.mxu0 %v694
        %716 = vmatprep.subr.mxu0 0.0
        %717 = vmatpush1.msra.mxu0 %v695
        %718 = vmatprep.subr.mxu0 0.0
        %719 = vmatpush1.msra.mxu0 %v696
        %720 = vmatprep.subr.mxu0 0.0
        %721 = vmatpush1.msra.mxu0 %v697
        %722 = vmatprep.subr.mxu0 0.0
        %723 = vmatpush1.msra.mxu0 %v698
        %724 = vmatprep.subr.mxu0 0.0
        %725 = vmatpush1.msra.mxu0 %v699
        %726 = vmatprep.subr.mxu0 0.0
        %727 = vmatpush1.msra.mxu0 %v700
        %728 = vmatprep.subr.mxu0 0.0
        %729 = vmatpush1.msra.mxu0 %v701
        %730 = vmatprep.subr.mxu0 0.0
        %731 = vmatpush1.msra.mxu0 %v702
        %732 = vmatprep.subr.mxu0 0.0
        %733 = vmatpush1.msra.mxu0 %v703
        %734 = vmatprep.subr.mxu0 0.0
        %735 = vmatpush1.msra.mxu0 %v704
        %736 = vmatprep.subr.mxu0 0.0
        %737 = vmatpush1.msra.mxu0 %v705
        %738 = vmatprep.subr.mxu0 0.0
        %739 = vmatpush1.msra.mxu0 0.0
        %740 = vmatprep.subr.mxu0 0.0
        %741 = vmatpush1.msra.mxu0 0.0
        %742 = vmatprep.subr.mxu0 0.0
        %743 = vmatpush1.msra.mxu0 0.0
        %744 = vmatprep.subr.mxu0 0.0
        %745 = vmatpush1.msra.mxu0 0.0
        %746 = vmatprep.subr.mxu0 0.0
        %747 = vmatpush1.msra.mxu0 0.0
        %748 = vmatprep.subr.mxu0 0.0
        %749 = vmatpush1.msra.mxu0 0.0
        %750 = vmatprep.subr.mxu0 0.0
        %751 = vmatpush1.msra.mxu0 0.0
        %752 = vmatprep.subr.mxu0 0.0
        %753 = vmatpush1.msra.mxu0 0.0
        %754 = vmatprep.subr.mxu0 0.0
        %755 = vmatpush1.msra.mxu0 0.0
        %756 = vmatprep.subr.mxu0 0.0
        %757 = vmatpush1.msra.mxu0 0.0
        %758 = vmatprep.subr.mxu0 0.0
        %759 = vmatpush1.msra.mxu0 0.0
        %760 = vmatprep.subr.mxu0 0.0
        %761 = vmatpush1.msra.mxu0 0.0
        %762 = vmatprep.subr.mxu0 0.0
        %763 = vmatpush1.msra.mxu0 0.0
        %764 = vmatprep.subr.mxu0 0.0
        %765 = vmatpush1.msra.mxu0 0.0
        %766 = vmatprep.subr.mxu0 0.0
        %767 = vmatpush1.msra.mxu0 0.0
        %768 = vmatprep.subr.mxu0 0.0
        %769 = vmatpush1.msra.mxu0 0.0
        %770 = vmatprep.mubr.f32.mxu0 0.0
        %771 = vmatmul.mubr.f32.gmra.mrb[0].mxu0 %v567
        %v772 = vpop.f32.mrb[0].mxu0
        %v773 = vadd.f32 0.0, %v772
        %v774 = vpop.f32.mrb[0].mxu0
        %775 = vdwg.mxu0
        %v776 = vmul.f32 %v773, 0.00390625
        %v777 = vsel %vm652, %v776, -inf
        %778 = vmax.xlane.f32.xlu0 %v777
        %v779 = vpop.xlane.xlu0 %778
        %v780 = vmax.f32 %v657, %v779
        %v781 = vsub.f32 %v657, %v780
        %v782 = vmul.f32 %v781, 1.442695
        %v783 = vpow.pop %v782
        %v784 = vsub.f32 %v776, %v780
        %v785 = vmul.f32 %v784, 1.442695
        %v786 = vpow.pop %v785
        %v787 = vsel %vm652, %v786, 0.0
        %788 = vadd.xlane.f32.xlu0 %v787
        %v789 = vpop.xlane.xlu0 %788
        %v790 = vadd.f32 %v783, %v789
        %v791 = vld [vmem:[%s547] sm:$0x3]
        %v793 = vlaneseq
        %v794 = vshrl.u32 %v793, 7
        %v795 = vsub.s32 0, %v794
        %v796 = vrot.slane %v791, %v795
        %v797 = vlaneseq
        %v798 = vshrl.u32 %v797, 7
        %v799 = vsub.s32 1, %v798
        %v800 = vrot.slane %v791, %v799
        %v803 = vmul.f32 %v783, %v796
        %v804 = vmul.f32 %v783, %v800
        %v805 = vld [vmem:[%s434] sm:$0xff]
        %v806 = vld [vmem:[%s434 + $0x8] sm:$0xff]
        %v807 = vld [vmem:[%s434 + $0x10] sm:$0xff]
        %v808 = vld [vmem:[%s434 + $0x18] sm:$0xff]
        %v809 = vld [vmem:[%s434 + $0x20] sm:$0xff]
        %v810 = vld [vmem:[%s434 + $0x28] sm:$0xff]
        %v811 = vld [vmem:[%s434 + $0x30] sm:$0xff]
        %v812 = vld [vmem:[%s434 + $0x38] sm:$0xff]
        %v813 = vld [vmem:[%s434 + $0x40] sm:$0xff]
        %v814 = vld [vmem:[%s434 + $0x48] sm:$0xff]
        %v815 = vld [vmem:[%s434 + $0x50] sm:$0xff]
        %v816 = vld [vmem:[%s434 + $0x58] sm:$0xff]
        %v817 = vld [vmem:[%s434 + $0x60] sm:$0xff]
        %v818 = vld [vmem:[%s434 + $0x68] sm:$0xff]
        %v819 = vld [vmem:[%s434 + $0x70] sm:$0xff]
        %v820 = vld [vmem:[%s434 + $0x78] sm:$0xff]
        %v821 = vld [vmem:[%s434 + $0x80] sm:$0xff]
        %v822 = vld [vmem:[%s434 + $0x88] sm:$0xff]
        %v823 = vld [vmem:[%s434 + $0x90] sm:$0xff]
        %v824 = vld [vmem:[%s434 + $0x98] sm:$0xff]
        %v825 = vld [vmem:[%s434 + $0xa0] sm:$0xff]
        %v826 = vld [vmem:[%s434 + $0xa8] sm:$0xff]
        %v827 = vld [vmem:[%s434 + $0xb0] sm:$0xff]
        %v828 = vld [vmem:[%s434 + $0xb8] sm:$0xff]
        %v829 = vld [vmem:[%s434 + $0xc0] sm:$0xff]
        %v830 = vld [vmem:[%s434 + $0xc8] sm:$0xff]
        %v831 = vld [vmem:[%s434 + $0xd0] sm:$0xff]
        %v832 = vld [vmem:[%s434 + $0xd8] sm:$0xff]
        %v833 = vld [vmem:[%s434 + $0xe0] sm:$0xff]
        %v834 = vld [vmem:[%s434 + $0xe8] sm:$0xff]
        %v835 = vld [vmem:[%s434 + $0xf0] sm:$0xff]
        %v836 = vld [vmem:[%s434 + $0xf8] sm:$0xff]
        %837 = vmatprep.subr.mxu0 %v806
        %838 = vmatpush1.msra.mxu0 %v805
        %839 = vmatprep.subr.mxu0 %v808
        %840 = vmatpush1.msra.mxu0 %v807
        %841 = vmatprep.subr.mxu0 %v810
        %842 = vmatpush1.msra.mxu0 %v809
        %843 = vmatprep.subr.mxu0 %v812
        %844 = vmatpush1.msra.mxu0 %v811
        %845 = vmatprep.subr.mxu0 %v814
        %846 = vmatpush1.msra.mxu0 %v813
        %847 = vmatprep.subr.mxu0 %v816
        %848 = vmatpush1.msra.mxu0 %v815
        %849 = vmatprep.subr.mxu0 %v818
        %850 = vmatpush1.msra.mxu0 %v817
        %851 = vmatprep.subr.mxu0 %v820
        %852 = vmatpush1.msra.mxu0 %v819
        %853 = vmatprep.subr.mxu0 %v822
        %854 = vmatpush1.msra.mxu0 %v821
        %855 = vmatprep.subr.mxu0 %v824
        %856 = vmatpush1.msra.mxu0 %v823
        %857 = vmatprep.subr.mxu0 %v826
        %858 = vmatpush1.msra.mxu0 %v825
        %859 = vmatprep.subr.mxu0 %v828
        %860 = vmatpush1.msra.mxu0 %v827
        %861 = vmatprep.subr.mxu0 %v830
        %862 = vmatpush1.msra.mxu0 %v829
        %863 = vmatprep.subr.mxu0 %v832
        %864 = vmatpush1.msra.mxu0 %v831
        %865 = vmatprep.subr.mxu0 %v834
        %866 = vmatpush1.msra.mxu0 %v833
        %867 = vmatprep.subr.mxu0 %v836
        %868 = vmatpush1.msra.mxu0 %v835
        %869 = vmatprep.subr.mxu0 0.0
        %870 = vmatpush1.msra.mxu0 0.0
        %871 = vmatprep.subr.mxu0 0.0
        %872 = vmatpush1.msra.mxu0 0.0
        %873 = vmatprep.subr.mxu0 0.0
        %874 = vmatpush1.msra.mxu0 0.0
        %875 = vmatprep.subr.mxu0 0.0
        %876 = vmatpush1.msra.mxu0 0.0
        %877 = vmatprep.subr.mxu0 0.0
        %878 = vmatpush1.msra.mxu0 0.0
        %879 = vmatprep.subr.mxu0 0.0
        %880 = vmatpush1.msra.mxu0 0.0
        %881 = vmatprep.subr.mxu0 0.0
        %882 = vmatpush1.msra.mxu0 0.0
        %883 = vmatprep.subr.mxu0 0.0
        %884 = vmatpush1.msra.mxu0 0.0
        %885 = vmatprep.subr.mxu0 0.0
        %886 = vmatpush1.msra.mxu0 0.0
        %887 = vmatprep.subr.mxu0 0.0
        %888 = vmatpush1.msra.mxu0 0.0
        %889 = vmatprep.subr.mxu0 0.0
        %890 = vmatpush1.msra.mxu0 0.0
        %891 = vmatprep.subr.mxu0 0.0
        %892 = vmatpush1.msra.mxu0 0.0
        %893 = vmatprep.subr.mxu0 0.0
        %894 = vmatpush1.msra.mxu0 0.0
        %895 = vmatprep.subr.mxu0 0.0
        %896 = vmatpush1.msra.mxu0 0.0
        %897 = vmatprep.subr.mxu0 0.0
        %898 = vmatpush1.msra.mxu0 0.0
        %899 = vmatprep.subr.mxu0 0.0
        %900 = vmatpush1.msra.mxu0 0.0
        %901 = vmatprep.mubr.f32.mxu0 0.0
        %902 = vmatmul.mubr.f32.gmra.mrb[0].mxu0 %v786
        %v903 = vpop.f32.mrb[0].mxu0
        %v904 = vadd.f32 0.0, %v903
        %v905 = vpop.f32.mrb[0].mxu0
        %v906 = vadd.f32 0.0, %v905
        %907 = vdwg.mxu0
        %v908 = vadd.f32 %v803, %v904
        %v909 = vadd.f32 %v804, %v906
        %v910 = vrcp.pop %v790
        %v911 = vmul.f32 %v908, %v910
        %v912 = vmul.f32 %v909, %v910
        %v915 = vcombine.low %v911, %v912
        %v917 = vunpack.c.l.s4 1966171168
        %v918 = vunpack.c.0.s8 %v917
        %v919 = vlaneseq
        %v920 = vshrl.u32 %v919, 7
        %v921 = vsub.s32 %v918, %v920
        %v922 = vrot.slane %v915, %v921
        %v924 = vunpack.c.l.s4 1966171168
        %v925 = vunpack.c.0.s8 %v924
        %v926 = vlaneseq
        %v927 = vshrl.u32 %v926, 7
        %v928 = vsub.s32 %v925, %v927
        %v929 = vrot.slane %v922, %v928
        %v931 = vlaneseq
        %vm932 = vcmp.ge.s32.totalorder %v931, 0
        %vm933 = vcmp.lt.s32.totalorder %v931, 256
        %vm934 = vmand %vm932, %vm933
        %935 = vst.msk [vmem:[%s555] sm:$0x3] %vm934, %v929
        %p936 = scmp.lt.s32.totalorder %s31, 1
        %s937 = scalar_select %p936, %s31, 1
        %p938 = scmp.lt.s32.totalorder %s32, 1
        %s939 = scalar_select %p938, %s32, 1
        %s940 = smul.addr %s939, 2
        %s941 = smul.addr %s937, 4
        %s942 = sadd.s32 %s940, %s941
        %s943 = scalar_lea.vmem %s8, %s942
        %p944 = scmp.lt.s32.totalorder %s31, 1
        %s945 = scalar_select %p944, %s31, 1
        %p946 = scmp.lt.s32.totalorder %s32, 1
        %s947 = scalar_select %p946, %s32, 1
        %s948 = smul.addr %s947, 32
        %s949 = smul.addr %s945, 64
        %s950 = sadd.s32 %s948, %s949
        %s951 = smul.addr %s950, 8
        %s952 = scalar_lea.vmem %s9, %s951
        // Predicated region
        $region61: #{rope_gen_orca_forward.1} parent=51 // pred_check
          %p953 = pneg %p269
        $region62: #{rope_gen_orca_forward.1} parent=51 // pred_check_branch
          %955 = sbr.rel (%p953) target = $region64
        $region63: #{rope_gen_orca_forward.1} parent=51 // pred_region
          _
        $region64: #{rope_gen_orca_forward.1} parent=51 // pred_fallthru
          _
        // Predicated region
        $region65: #{rope_gen_orca_forward.1} parent=51 // pred_check
          %p956 = pneg %p297
        $region66: #{rope_gen_orca_forward.1} parent=51 // pred_check_branch
          %958 = sbr.rel (%p956) target = $region68
        $region67: #{rope_gen_orca_forward.1} parent=51 // pred_region
          _
        $region68: #{rope_gen_orca_forward.1} parent=51 // pred_fallthru
          _
      $region52: #{rope_gen_orca_forward.1} parent=5 // pred_fallthru
        _
      %p959 = scmp.le.s32.totalorder 2, %s22
      // Predicated region
      $region69: #{rope_gen_orca_forward.1} parent=5 // pred_check
        %p960 = pneg %p959
      $region70: #{rope_gen_orca_forward.1} parent=5 // pred_check_branch
        %962 = sbr.rel (%p960) target = $region72
      $region71: #{rope_gen_orca_forward.1} parent=5 // pred_region
        %s963 = ssub.s32 %s22, 2
        // Predicated region
        $region73: #{rope_gen_orca_forward.1} parent=71 // pred_check
          %p964 = pneg %p275
        $region74: #{rope_gen_orca_forward.1} parent=71 // pred_check_branch
          %966 = sbr.rel (%p964) target = $region76
        $region75: #{rope_gen_orca_forward.1} parent=71 // pred_region
          %p967 = scmp.lt.s32.totalorder %s33, 1
          %s968 = scalar_select %p967, %s33, 1
          %p969 = scmp.lt.s32.totalorder %s34, 1
          %s970 = scalar_select %p969, %s34, 1
          %s971 = smul.addr %s970, 2
          %s972 = smul.addr %s968, 4
          %s973 = sadd.s32 %s971, %s972
          %s974 = scalar_lea.vmem %s8, %s973
        $region76: #{rope_gen_orca_forward.1} parent=71 // pred_fallthru
          _
        // Predicated region
        $region77: #{rope_gen_orca_forward.1} parent=71 // pred_check
          %p975 = pneg %p303
        $region78: #{rope_gen_orca_forward.1} parent=71 // pred_check_branch
          %977 = sbr.rel (%p975) target = $region80
        $region79: #{rope_gen_orca_forward.1} parent=71 // pred_region
          %p978 = scmp.lt.s32.totalorder %s33, 1
          %s979 = scalar_select %p978, %s33, 1
          %p980 = scmp.lt.s32.totalorder %s34, 1
          %s981 = scalar_select %p980, %s34, 1
          %s982 = smul.addr %s981, 32
          %s983 = smul.addr %s979, 64
          %s984 = sadd.s32 %s982, %s983
          %s985 = smul.addr %s984, 8
          %s986 = scalar_lea.vmem %s9, %s985
        $region80: #{rope_gen_orca_forward.1} parent=71 // pred_fallthru
          _
      $region72: #{rope_gen_orca_forward.1} parent=5 // pred_fallthru
        _
    $region6: #{rope_gen_orca_forward.1} parent=1 // loop_footer
      %s26 = sadd.s32 1, %s22
    $region7: #{rope_gen_orca_forward.1} parent=1 // loop_footer_branch
      %21 = sbr.rel target = $region3
    $region8: #{rope_gen_orca_forward.1} parent=1 // loop_exit
      _
    %987 = vsyncpa [#allocation3], 1
    %s988 = scalar_lea.sflag [#allocation3], 1
    %989 = vsyncpa %s988, 1
    %990 = vsyncpa [#allocation5], 1
    %s991 = scalar_lea.sflag [#allocation5], 1
    %992 = vsyncpa %s991, 1

</llo_original>
